<compile_context>
chip_gen: v6e
topology: v6e:2x2x1
jax: 0.10.0
libtpu: 0.0.40
codegen_flags: <defaults>
</compile_context>

<pallas_src>
import functools

import jax
import jax.numpy as jnp
from jax.experimental import pallas as pl
from jax.experimental.pallas import tpu as pltpu


# ----------------------------------------------------------------------------
# Pallas kernel: whole forward hot path (MLP -> g*N + g0), feature-major
# ----------------------------------------------------------------------------
def _pinn_kernel(num_layers, compute_dtype, bounds_ref, x_ref, *rest):
    """One lane-dense tile of points.

    bounds_ref : SMEM (4,)  = [lb0, ub0, lb1, ub1]
    x_ref      : VMEM (2, TM)  coordinates, point dim on lanes
    rest       : [W0, b0, ..., W_{L-1}, b_{L-1}, out_ref]
                 W_l: (d_{l+1}, d_l) feature-major (layer 0 has the coordinate
                 shift pre-folded and stays f32; the rest are compute_dtype),
                 b_l: (d_{l+1}, 1) f32.
    out_ref    : VMEM (1, TM)
    """
    out_ref = rest[-1]
    wb = rest[:-1]

    xt = x_ref[...]                                   # (2, TM) f32
    x1 = xt[0:1, :]                                   # (1, TM)  (static slice)
    x2 = xt[1:2, :]                                   # (1, TM)

    # ---- layer 0 on the VPU: a (d1,2)@(2,TM) matmul would use <2% of the MXU
    # and sit at the head of the dependency chain; two broadcast FMAs start
    # the tanh chain sooner. Coordinate shift is already folded into W0/b0.
    w0 = wb[0][...]                                   # (d1, 2) f32
    b0 = wb[1][...]                                   # (d1, 1) f32
    acc = w0[:, 0:1] * x1 + w0[:, 1:2] * x2 + b0      # (d1, TM) f32
    # tanh in compute_dtype: bf16 packs 2x elems per vreg on v6e/v7x EUP.
    h = jnp.tanh(acc.astype(compute_dtype))

    # ---- hidden layers 1..L-2: MXU matmul, f32 accumulate, tanh in
    # compute_dtype.
    for l in range(1, num_layers - 1):
        w = wb[2 * l][...]                            # (d_out, d_in) compute_dtype
        b = wb[2 * l + 1][...]                        # (d_out, 1)    f32
        acc = jnp.dot(w, h, preferred_element_type=jnp.float32) + b
        h = jnp.tanh(acc.astype(compute_dtype))

    # ---- final linear layer: compute_dtype x compute_dtype matmul with f32
    # accumulation (single MXU pass); bias add and psi combination stay f32.
    w = wb[2 * (num_layers - 1)][...]                 # (1, d_last) compute_dtype
    b = wb[2 * (num_layers - 1) + 1][...]             # (1, 1)      f32
    n_out = jnp.dot(w, h, preferred_element_type=jnp.float32) + b   # (1, TM)

    # boundary factor g and lift g0 (SMEM scalar reads, vector broadcast)
    lb0 = bounds_ref[0]
    ub0 = bounds_ref[1]
    lb1 = bounds_ref[2]
    ub1 = bounds_ref[3]
    g = (x1 - lb0) * (x1 - ub0) * (x2 - lb1) * (x2 - ub1)
    # TODO(synk): g0 is user-supplied via train_dict in the PyTorch model; a
    # deterministic sin(pi*x1)*sin(pi*x2) stand-in is used here.
    g0 = jnp.sin(jnp.pi * x1) * jnp.sin(jnp.pi * x2)

    out_ref[...] = g * n_out + g0


# ----------------------------------------------------------------------------
# Wrapper
# ----------------------------------------------------------------------------
def _num_tensorcores():
    """Best-effort TC count per chip; only used to pick a tile size."""
    try:
        kind = jax.devices()[0].device_kind.lower()
        return 2 if "v7" in kind else 1
    except Exception:  # pragma: no cover - defensive
        return 1


def pinn_forward(x1, x2, lb, ub, weights, biases, *, tile_m=None,
                 compute_dtype=jnp.float32):
    """x1, x2: (N, 1) f32; lb, ub: (1, 2) f32; weights[l]: (d_l, d_{l+1});
    biases[l]: (1, d_{l+1}). Returns psi: (N, 1) f32.

    compute_dtype=jnp.bfloat16 packs hidden tanh/matmul work (recommended on
    v6e/v7x); keep the default float32 on v5e (no bf16 VPU/EUP)."""
    n = x1.shape[0]
    num_layers = len(weights)

    # --- tile selection: lane-dense (multiple of 128), as large as possible
    # (cap 8192) to amortize the ~0.35 us per-grid-step overhead. On
    # 2-TensorCore chips keep >=2 grid steps when N allows so the "parallel"
    # axis shards across both cores; on 1-TC chips prefer one maximal tile.
    cap = 8192
    if tile_m is None:
        if _num_tensorcores() >= 2 and n >= 256:
            tile_m = min(cap, 128 * pl.cdiv(n, 256))   # >= 2 grid steps
        else:
            tile_m = min(cap, 128 * pl.cdiv(n, 128))   # single maximal tile
    tile_m = max(128, 128 * pl.cdiv(int(tile_m), 128))
    tile_m = min(tile_m, cap)
    n_pad = tile_m * pl.cdiv(n, tile_m)
    grid = (n_pad // tile_m,)

    lb = jnp.asarray(lb, jnp.float32).reshape(1, 2)
    ub = jnp.asarray(ub, jnp.float32).reshape(1, 2)

    # --- fold coordinate shift 2*(X-lb)/(ub-lb)-1 into layer-0 parameters:
    #     Xs @ W0 + b0 == X @ (scale^T * W0) + (shift @ W0 + b0)
    scale = 2.0 / (ub - lb)                         # (1, 2)
    shift = -2.0 * lb / (ub - lb) - 1.0             # (1, 2)
    w0_eff = weights[0] * scale.T                   # (2, d1)
    b0_eff = shift @ weights[0] + biases[0]         # (1, d1)

    # --- feature-major parameters (point dim sits on lanes in-kernel)
    wts = [w0_eff.T] + [w.T for w in weights[1:]]   # (d_out, d_in)
    bss = [b0_eff.T] + [b.T for b in biases[1:]]    # (d_out, 1)

    wb_args, wb_specs = [], []
    for l in range(num_layers):
        # Layer 0 runs on the VPU -> keep f32; matmul layers (incl. the final
        # linear layer) carry compute_dtype weights; biases stay f32.
        w_dt = jnp.float32 if l == 0 else compute_dtype
        w = wts[l].astype(w_dt)
        b = bss[l].astype(jnp.float32)
        wb_args += [w, b]
        # Constant block index across the grid -> parameters stay resident in
        # VMEM (Pallas skips the re-DMA when the block index does not change).
        wb_specs += [pl.BlockSpec(w.shape, lambda i: (0, 0)),
                     pl.BlockSpec(b.shape, lambda i: (0, 0))]

    # --- single coordinate input, transposed to (2, N) and lane-padded
    xt = jnp.concatenate([x1, x2], axis=1).T.astype(jnp.float32)   # (2, N)
    if n_pad != n:
        xt = jnp.pad(xt, ((0, 0), (0, n_pad - n)))

    bounds = jnp.stack(
        [lb[0, 0], ub[0, 0], lb[0, 1], ub[0, 1]]).astype(jnp.float32)  # (4,)

    in_specs = [
        pl.BlockSpec(memory_space=pltpu.MemorySpace.SMEM),   # bounds -> SMEM
        pl.BlockSpec((2, tile_m), lambda i: (0, i)),         # coordinates
    ] + wb_specs
    out_specs = pl.BlockSpec((1, tile_m), lambda i: (0, i))  # lane-dense slab

    # --- cost estimate: transcendental-dominated, tiny bytes
    mm_flops = sum(2 * w.shape[0] * w.shape[1] for w in wts)
    hidden_units = sum(w.shape[0] for w in wts[:-1])
    param_bytes = sum(int(a.size) * int(a.dtype.itemsize) for a in wb_args)
    cost = pl.CostEstimate(
        flops=int(n_pad * (mm_flops + 16)),
        transcendentals=int(n_pad * (hidden_units + 2)),
        bytes_accessed=int(12 * n_pad + param_bytes),
    )

    kernel = functools.partial(_pinn_kernel, num_layers, compute_dtype)

    out = pl.pallas_call(
        kernel,
        out_shape=jax.ShapeDtypeStruct((1, n_pad), jnp.float32),
        grid_spec=pltpu.PrefetchScalarGridSpec(
            num_scalar_prefetch=0,
            grid=grid,
            in_specs=in_specs,
            out_specs=out_specs,
        ),
        compiler_params=pltpu.CompilerParams(
            dimension_semantics=("parallel",)),
        cost_estimate=cost,
    )(bounds, xt, *wb_args)

    # Padded lanes hold garbage beyond column n; slice before exposing.
    return out[:, :n].T                              # (N, 1)


# ----------------------------------------------------------------------------
# Deterministic parameter init (xavier_normal weights, zero biases)
# ----------------------------------------------------------------------------
def init_mlp(key, layers):
    weights, biases = [], []
    for l in range(len(layers) - 1):
        key, sub = jax.random.split(key)
        fan_in, fan_out = layers[l], layers[l + 1]
        std = jnp.sqrt(2.0 / (fan_in + fan_out))
        W = std * jax.random.normal(sub, (fan_in, fan_out), dtype=jnp.float32)
        b = jnp.zeros((1, fan_out), dtype=jnp.float32)
        weights.append(W)
        biases.append(b)
    return weights, biases


# ----------------------------------------------------------------------------
# Pure-JAX reference for correctness
# ----------------------------------------------------------------------------
def pinn_forward_ref(x1, x2, lb, ub, weights, biases):
    X = jnp.concatenate([x1, x2], axis=1)
    Xs = 2.0 * (X - lb) / (ub - lb) - 1.0
    h = Xs
    for W, b in zip(weights[:-1], biases[:-1]):
        h = jnp.tanh(h @ W + b)
    n_out = h @ weights[-1] + biases[-1]
    g = (x1 - lb[0, 0]) * (x1 - ub[0, 0]) * (x2 - lb[0, 1]) * (x2 - ub[0, 1])
    g0 = jnp.sin(jnp.pi * x1) * jnp.sin(jnp.pi * x2)
    return g * n_out + g0


if __name__ == "__main__":
    key = jax.random.PRNGKey(0)

    # psi1 network: [2, 32, 32, 32, 1]  (tanh hidden layers, linear output)
    psi1_layers = [2, 32, 32, 32, 1]

    lb = jnp.array([[-1.5, -0.5]], dtype=jnp.float32)
    ub = jnp.array([[2.0, 1.0]], dtype=jnp.float32)

    key, kw = jax.random.split(key)
    weights, biases = init_mlp(kw, psi1_layers)

    ok = True
    for n in (256, 200):   # 256: lane-dense tiles; 200: padded remainder
        key, k1, k2 = jax.random.split(key, 3)
        x1 = jax.random.uniform(k1, (n, 1), dtype=jnp.float32,
                                minval=float(lb[0, 0]), maxval=float(ub[0, 0]))
        x2 = jax.random.uniform(k2, (n, 1), dtype=jnp.float32,
                                minval=float(lb[0, 1]), maxval=float(ub[0, 1]))

        psi_ref = pinn_forward_ref(x1, x2, lb, ub, weights, biases)

        # f32 path (default; correct choice for v5e), tight tolerance.
        psi = pinn_forward(x1, x2, lb, ub, weights, biases)
        psi = jax.block_until_ready(psi)
        ok &= (psi.shape == (n, 1))
        ok &= bool(jnp.allclose(psi, psi_ref, atol=1e-4, rtol=1e-4))

    # bf16 hidden path (recommended on v6e/v7x): loose tolerance vs f32 ref.
    n = 256
    key, k1, k2 = jax.random.split(key, 3)
    x1 = jax.random.uniform(k1, (n, 1), dtype=jnp.float32,
                            minval=float(lb[0, 0]), maxval=float(ub[0, 0]))
    x2 = jax.random.uniform(k2, (n, 1), dtype=jnp.float32,
                            minval=float(lb[0, 1]), maxval=float(ub[0, 1]))
    psi_bf16 = pinn_forward(x1, x2, lb, ub, weights, biases,
                            compute_dtype=jnp.bfloat16)
    psi_bf16 = jax.block_until_ready(psi_bf16)
    psi_ref = pinn_forward_ref(x1, x2, lb, ub, weights, biases)
    ok &= (psi_bf16.shape == (n, 1))
    ok &= bool(jnp.all(jnp.isfinite(psi_bf16)))
    ok &= bool(jnp.allclose(psi_bf16, psi_ref, atol=1e-1, rtol=1e-1))

    assert ok
    print("KERNEL_OK")
</pallas_src>

<mosaic_0001>
module attributes {stable_mosaic.version = 11 : i64} {
  func.func @_pinn_kernel(%arg0: i32, %arg1: memref<4xf32, #tpu.memory_space<smem>>, %arg2: memref<2x256xf32, #tpu.memory_space<vmem>>, %arg3: memref<32x2xf32, #tpu.memory_space<vmem>>, %arg4: memref<32x1xf32, #tpu.memory_space<vmem>>, %arg5: memref<32x32xf32, #tpu.memory_space<vmem>>, %arg6: memref<32x1xf32, #tpu.memory_space<vmem>>, %arg7: memref<32x32xf32, #tpu.memory_space<vmem>>, %arg8: memref<32x1xf32, #tpu.memory_space<vmem>>, %arg9: memref<1x32xf32, #tpu.memory_space<vmem>>, %arg10: memref<1x1xf32, #tpu.memory_space<vmem>>, %arg11: memref<1x256xf32, #tpu.memory_space<vmem>>) attributes {dimension_semantics = [#tpu.dimension_semantics<parallel>], iteration_bounds = array<i64: 1>, scalar_prefetch = 0 : i64, scratch_operands = 0 : i64, tpu.core_type = #tpu.core_type<tc>, window_params = [{transform_indices = @transform_0, window_bounds = array<i64: 4>}, {transform_indices = @transform_1, window_bounds = array<i64: 2, 256>}, {pipeline_mode = #tpu.pipeline_mode<synchronous>, transform_indices = @transform_2, window_bounds = array<i64: 32, 2>}, {pipeline_mode = #tpu.pipeline_mode<synchronous>, transform_indices = @transform_3, window_bounds = array<i64: 32, 1>}, {pipeline_mode = #tpu.pipeline_mode<synchronous>, transform_indices = @transform_4, window_bounds = array<i64: 32, 32>}, {pipeline_mode = #tpu.pipeline_mode<synchronous>, transform_indices = @transform_5, window_bounds = array<i64: 32, 1>}, {pipeline_mode = #tpu.pipeline_mode<synchronous>, transform_indices = @transform_6, window_bounds = array<i64: 32, 32>}, {pipeline_mode = #tpu.pipeline_mode<synchronous>, transform_indices = @transform_7, window_bounds = array<i64: 32, 1>}, {pipeline_mode = #tpu.pipeline_mode<synchronous>, transform_indices = @transform_8, window_bounds = array<i64: 1, 32>}, {pipeline_mode = #tpu.pipeline_mode<synchronous>, transform_indices = @transform_9, window_bounds = array<i64: 1, 1>}, {transform_indices = @transform_10, window_bounds = array<i64: 1, 256>}]} {
    %c0 = arith.constant 0 : index
    %c0_0 = arith.constant 0 : index
    %0 = vector.load %arg2[%c0, %c0_0] : memref<2x256xf32, #tpu.memory_space<vmem>>, vector<2x256xf32>
    %1 = vector.extract_strided_slice %0 {offsets = [0, 0], sizes = [1, 256], strides = [1, 1]} : vector<2x256xf32> to vector<1x256xf32>
    %2 = vector.extract_strided_slice %0 {offsets = [1, 0], sizes = [1, 256], strides = [1, 1]} : vector<2x256xf32> to vector<1x256xf32>
    %c0_1 = arith.constant 0 : index
    %c0_2 = arith.constant 0 : index
    %3 = vector.load %arg3[%c0_1, %c0_2] : memref<32x2xf32, #tpu.memory_space<vmem>>, vector<32x2xf32>
    %c0_3 = arith.constant 0 : index
    %c0_4 = arith.constant 0 : index
    %4 = vector.load %arg4[%c0_3, %c0_4] : memref<32x1xf32, #tpu.memory_space<vmem>>, vector<32x1xf32>
    %5 = vector.extract_strided_slice %3 {offsets = [0, 0], sizes = [32, 1], strides = [1, 1]} : vector<32x2xf32> to vector<32x1xf32>
    %6 = vector.broadcast %5 : vector<32x1xf32> to vector<32x256xf32>
    %7 = vector.broadcast %1 : vector<1x256xf32> to vector<32x256xf32>
    %8 = arith.mulf %6, %7 : vector<32x256xf32>
    %9 = vector.extract_strided_slice %3 {offsets = [0, 1], sizes = [32, 1], strides = [1, 1]} : vector<32x2xf32> to vector<32x1xf32>
    %10 = vector.broadcast %9 : vector<32x1xf32> to vector<32x256xf32>
    %11 = vector.broadcast %2 : vector<1x256xf32> to vector<32x256xf32>
    %12 = arith.mulf %10, %11 : vector<32x256xf32>
    %13 = arith.addf %8, %12 : vector<32x256xf32>
    %14 = vector.broadcast %4 : vector<32x1xf32> to vector<32x256xf32>
    %15 = arith.addf %13, %14 : vector<32x256xf32>
    %16 = math.tanh %15 : vector<32x256xf32>
    %c0_5 = arith.constant 0 : index
    %c0_6 = arith.constant 0 : index
    %17 = vector.load %arg5[%c0_5, %c0_6] : memref<32x32xf32, #tpu.memory_space<vmem>>, vector<32x32xf32>
    %c0_7 = arith.constant 0 : index
    %c0_8 = arith.constant 0 : index
    %18 = vector.load %arg6[%c0_7, %c0_8] : memref<32x1xf32, #tpu.memory_space<vmem>>, vector<32x1xf32>
    %cst = arith.constant dense<0.000000e+00> : vector<32x256xf32>
    %19 = tpu.matmul %17, %16, %cst {dimension_numbers = #tpu.dot_dimension_numbers<[1], [0], [0], [1], [0, 0, 1, 1], [], []>} : vector<32x32xf32>, vector<32x256xf32>, vector<32x256xf32> -> vector<32x256xf32>
    %20 = vector.broadcast %18 : vector<32x1xf32> to vector<32x256xf32>
    %21 = arith.addf %19, %20 : vector<32x256xf32>
    %22 = math.tanh %21 : vector<32x256xf32>
    %c0_9 = arith.constant 0 : index
    %c0_10 = arith.constant 0 : index
    %23 = vector.load %arg7[%c0_9, %c0_10] : memref<32x32xf32, #tpu.memory_space<vmem>>, vector<32x32xf32>
    %c0_11 = arith.constant 0 : index
    %c0_12 = arith.constant 0 : index
    %24 = vector.load %arg8[%c0_11, %c0_12] : memref<32x1xf32, #tpu.memory_space<vmem>>, vector<32x1xf32>
    %cst_13 = arith.constant dense<0.000000e+00> : vector<32x256xf32>
    %25 = tpu.matmul %23, %22, %cst_13 {dimension_numbers = #tpu.dot_dimension_numbers<[1], [0], [0], [1], [0, 0, 1, 1], [], []>} : vector<32x32xf32>, vector<32x256xf32>, vector<32x256xf32> -> vector<32x256xf32>
    %26 = vector.broadcast %24 : vector<32x1xf32> to vector<32x256xf32>
    %27 = arith.addf %25, %26 : vector<32x256xf32>
    %28 = math.tanh %27 : vector<32x256xf32>
    %c0_14 = arith.constant 0 : index
    %c0_15 = arith.constant 0 : index
    %29 = vector.load %arg9[%c0_14, %c0_15] : memref<1x32xf32, #tpu.memory_space<vmem>>, vector<1x32xf32>
    %c0_16 = arith.constant 0 : index
    %c0_17 = arith.constant 0 : index
    %30 = vector.load %arg10[%c0_16, %c0_17] : memref<1x1xf32, #tpu.memory_space<vmem>>, vector<1x1xf32>
    %cst_18 = arith.constant dense<0.000000e+00> : vector<1x256xf32>
    %31 = tpu.matmul %29, %28, %cst_18 {dimension_numbers = #tpu.dot_dimension_numbers<[1], [0], [0], [1], [0, 0, 1, 1], [], []>} : vector<1x32xf32>, vector<32x256xf32>, vector<1x256xf32> -> vector<1x256xf32>
    %32 = vector.broadcast %30 : vector<1x1xf32> to vector<1x256xf32>
    %33 = arith.addf %31, %32 : vector<1x256xf32>
    %c0_19 = arith.constant 0 : index
    %34 = memref.load %arg1[%c0_19] : memref<4xf32, #tpu.memory_space<smem>>
    %c1 = arith.constant 1 : index
    %35 = memref.load %arg1[%c1] : memref<4xf32, #tpu.memory_space<smem>>
    %c2 = arith.constant 2 : index
    %36 = memref.load %arg1[%c2] : memref<4xf32, #tpu.memory_space<smem>>
    %c3 = arith.constant 3 : index
    %37 = memref.load %arg1[%c3] : memref<4xf32, #tpu.memory_space<smem>>
    %38 = vector.broadcast %34 : f32 to vector<1x256xf32>
    %39 = arith.subf %1, %38 : vector<1x256xf32>
    %40 = vector.broadcast %35 : f32 to vector<1x256xf32>
    %41 = arith.subf %1, %40 : vector<1x256xf32>
    %42 = arith.mulf %39, %41 : vector<1x256xf32>
    %43 = vector.broadcast %36 : f32 to vector<1x256xf32>
    %44 = arith.subf %2, %43 : vector<1x256xf32>
    %45 = arith.mulf %42, %44 : vector<1x256xf32>
    %46 = vector.broadcast %37 : f32 to vector<1x256xf32>
    %47 = arith.subf %2, %46 : vector<1x256xf32>
    %48 = arith.mulf %45, %47 : vector<1x256xf32>
    %cst_20 = arith.constant 3.14159274 : f32
    %49 = vector.broadcast %cst_20 : f32 to vector<1x256xf32>
    %50 = arith.mulf %49, %1 : vector<1x256xf32>
    %51 = math.sin %50 : vector<1x256xf32>
    %cst_21 = arith.constant 3.14159274 : f32
    %52 = vector.broadcast %cst_21 : f32 to vector<1x256xf32>
    %53 = arith.mulf %52, %2 : vector<1x256xf32>
    %54 = math.sin %53 : vector<1x256xf32>
    %55 = arith.mulf %51, %54 : vector<1x256xf32>
    %56 = arith.mulf %48, %33 : vector<1x256xf32>
    %57 = arith.addf %56, %55 : vector<1x256xf32>
    %c0_22 = arith.constant 0 : index
    %c0_23 = arith.constant 0 : index
    %58 = vector.load %arg11[%c0_22, %c0_23] : memref<1x256xf32, #tpu.memory_space<vmem>>, vector<1x256xf32>
    tpu.vector_store %arg11[%c0_22, %c0_23], %57 {strides = array<i32>} : memref<1x256xf32, #tpu.memory_space<vmem>>, vector<1x256xf32>,
    return
  }
  func.func @transform_0(%arg0: i32) -> i32 {
    %c0_i32 = arith.constant 0 : i32
    %c0_i32_0 = arith.constant 0 : i32
    return %c0_i32 : i32
  }
  func.func @transform_1(%arg0: i32) -> (i32, i32) {
    %c0_i32 = arith.constant 0 : i32
    %c0_i32_0 = arith.constant 0 : i32
    return %c0_i32, %arg0 : i32, i32
  }
  func.func @transform_2(%arg0: i32) -> (i32, i32) {
    %c0_i32 = arith.constant 0 : i32
    %c0_i32_0 = arith.constant 0 : i32
    %c0_i32_1 = arith.constant 0 : i32
    return %c0_i32, %c0_i32_0 : i32, i32
  }
  func.func @transform_3(%arg0: i32) -> (i32, i32) {
    %c0_i32 = arith.constant 0 : i32
    %c0_i32_0 = arith.constant 0 : i32
    %c0_i32_1 = arith.constant 0 : i32
    return %c0_i32, %c0_i32_0 : i32, i32
  }
  func.func @transform_4(%arg0: i32) -> (i32, i32) {
    %c0_i32 = arith.constant 0 : i32
    %c0_i32_0 = arith.constant 0 : i32
    %c0_i32_1 = arith.constant 0 : i32
    return %c0_i32, %c0_i32_0 : i32, i32
  }
  func.func @transform_5(%arg0: i32) -> (i32, i32) {
    %c0_i32 = arith.constant 0 : i32
    %c0_i32_0 = arith.constant 0 : i32
    %c0_i32_1 = arith.constant 0 : i32
    return %c0_i32, %c0_i32_0 : i32, i32
  }
  func.func @transform_6(%arg0: i32) -> (i32, i32) {
    %c0_i32 = arith.constant 0 : i32
    %c0_i32_0 = arith.constant 0 : i32
    %c0_i32_1 = arith.constant 0 : i32
    return %c0_i32, %c0_i32_0 : i32, i32
  }
  func.func @transform_7(%arg0: i32) -> (i32, i32) {
    %c0_i32 = arith.constant 0 : i32
    %c0_i32_0 = arith.constant 0 : i32
    %c0_i32_1 = arith.constant 0 : i32
    return %c0_i32, %c0_i32_0 : i32, i32
  }
  func.func @transform_8(%arg0: i32) -> (i32, i32) {
    %c0_i32 = arith.constant 0 : i32
    %c0_i32_0 = arith.constant 0 : i32
    %c0_i32_1 = arith.constant 0 : i32
    return %c0_i32, %c0_i32_0 : i32, i32
  }
  func.func @transform_9(%arg0: i32) -> (i32, i32) {
    %c0_i32 = arith.constant 0 : i32
    %c0_i32_0 = arith.constant 0 : i32
    %c0_i32_1 = arith.constant 0 : i32
    return %c0_i32, %c0_i32_0 : i32, i32
  }
  func.func @transform_10(%arg0: i32) -> (i32, i32) {
    %c0_i32 = arith.constant 0 : i32
    %c0_i32_0 = arith.constant 0 : i32
    return %c0_i32, %arg0 : i32, i32
  }
}

</mosaic_0001>

<llo_original>
// kernel: tpu_custom_call.1
$region0: #{tpu_custom_call.1}
  #allocation0 [shape = 'u32[]', space=smem, size = 0x4, offset = 0x4, fixed_abs, tag = 'smem constant byte address 0x4 - core index']
  #allocation1 [shape = 'u32[144,128]{1,0:T(1,128)}', space=vmem, size = 0x12000, scoped, tag = 'internal scratch']
  #allocation2 [shape = 'f32[1,1]{1,0:T(1,128)S(1)}', space=vmem, size = 0x200, scoped, tag = 'scoped memory for tpu_custom_call.1']
  %s0 = inlined_call_operand.vmem [shape: f32[4], index: 0, kind: input, shape index: {}]
  %s1 = inlined_call_operand.vmem [shape: f32[2,256], index: 1, kind: input, shape index: {}]
  %s2 = inlined_call_operand.vmem [shape: f32[32,2], index: 2, kind: input, shape index: {}]
  %s3 = inlined_call_operand.vmem [shape: f32[32,1], index: 3, kind: input, shape index: {}]
  %s4 = inlined_call_operand.vmem [shape: f32[32,32], index: 4, kind: input, shape index: {}]
  %s5 = inlined_call_operand.vmem [shape: f32[32,1], index: 5, kind: input, shape index: {}]
  %s6 = inlined_call_operand.vmem [shape: f32[32,32], index: 6, kind: input, shape index: {}]
  %s7 = inlined_call_operand.vmem [shape: f32[32,1], index: 7, kind: input, shape index: {}]
  %s8 = inlined_call_operand.vmem [shape: f32[1,32], index: 8, kind: input, shape index: {}]
  %s9 = inlined_call_operand.<no memory space> [shape: f32[1,1], index: 9, kind: input, shape index: {}]
  %s10 = inlined_call_operand.hbm [shape: f32[1,256], index: 10, kind: output, shape index: {}]
  %s11 = sld [smem:[#allocation0]]
  $region54: #{tpu_custom_call.1} parent=0
    _
  %s13 = ssub.s32 1, %s11
  %s14 = scalar_select 0, %s13, %s11
  %v15 = vstv %s9
  %16 = vst [vmem:[#allocation2] sm:$0x1] %v15
  $region1: #{tpu_custom_call.1} parent=0
    #allocation3 [shape = 'u8[512]{0}', space=smem, size = 0x200, scoped, tag = 'input window, operand 0, single buffered']
    #allocation4 [shape = 's32[1]{0}', space=sflag, size = 0x4, scoped, tag = 'scoped memory for tpu_custom_call.1']
    #allocation5 [shape = 's32[1]{0}', space=sflag, size = 0x4, scoped, tag = 'scoped memory for tpu_custom_call.1']
    #allocation6 [shape = 'u8[1024]{0}', space=vmem, size = 0x400, scoped, tag = 'output window, operand 0, single buffered']
    %17 = vsyncpa [#allocation5], 0
    %18 = vsyncpa [#allocation4], 0
    // Predicated region
    $region2: #{tpu_custom_call.1} parent=1 // pred_check
      _
    $region3: #{tpu_custom_call.1} parent=1 // pred_check_branch
      %20 = sbr.rel (0) target = $region5
    $region4: #{tpu_custom_call.1} parent=1 // pred_region
      %s22 = ssub.s32 16, 16
      %23 = vsyncadd [#allocation5], %s22
      %s25 = sshll.u32 %s0, 4
      %s26 = int_to_ptr.vmem [resolvable:$true] %s25
      %28 = dma.vmem_to_smem %s26, 16, [#allocation3], [#allocation5]
    $region5: #{tpu_custom_call.1} parent=1 // pred_fallthru
      _
    // Predicated region
    $region6: #{tpu_custom_call.1} parent=1 // pred_check
      _
    $region7: #{tpu_custom_call.1} parent=1 // pred_check_branch
      %30 = sbr.rel (0) target = $region9
    $region8: #{tpu_custom_call.1} parent=1 // pred_region
      _
    $region9: #{tpu_custom_call.1} parent=1 // pred_fallthru
      _
    // Predicated region
    $region10: #{tpu_custom_call.1} parent=1 // pred_check
      _
    $region11: #{tpu_custom_call.1} parent=1 // pred_check_branch
      %32 = sbr.rel (0) target = $region13
    $region12: #{tpu_custom_call.1} parent=1 // pred_region
      _
    $region13: #{tpu_custom_call.1} parent=1 // pred_fallthru
      _
    // Predicated region
    $region14: #{tpu_custom_call.1} parent=1 // pred_check
      _
    $region15: #{tpu_custom_call.1} parent=1 // pred_check_branch
      %34 = sbr.rel (0) target = $region17
    $region16: #{tpu_custom_call.1} parent=1 // pred_region
      _
    $region17: #{tpu_custom_call.1} parent=1 // pred_fallthru
      _
    // Predicated region
    $region18: #{tpu_custom_call.1} parent=1 // pred_check
      _
    $region19: #{tpu_custom_call.1} parent=1 // pred_check_branch
      %36 = sbr.rel (0) target = $region21
    $region20: #{tpu_custom_call.1} parent=1 // pred_region
      _
    $region21: #{tpu_custom_call.1} parent=1 // pred_fallthru
      _
    // Predicated region
    $region22: #{tpu_custom_call.1} parent=1 // pred_check
      _
    $region23: #{tpu_custom_call.1} parent=1 // pred_check_branch
      %38 = sbr.rel (0) target = $region25
    $region24: #{tpu_custom_call.1} parent=1 // pred_region
      _
    $region25: #{tpu_custom_call.1} parent=1 // pred_fallthru
      _
    // Predicated region
    $region26: #{tpu_custom_call.1} parent=1 // pred_check
      _
    $region27: #{tpu_custom_call.1} parent=1 // pred_check_branch
      %40 = sbr.rel (0) target = $region29
    $region28: #{tpu_custom_call.1} parent=1 // pred_region
      _
    $region29: #{tpu_custom_call.1} parent=1 // pred_fallthru
      _
    // Predicated region
    $region30: #{tpu_custom_call.1} parent=1 // pred_check
      _
    $region31: #{tpu_custom_call.1} parent=1 // pred_check_branch
      %42 = sbr.rel (0) target = $region33
    $region32: #{tpu_custom_call.1} parent=1 // pred_region
      _
    $region33: #{tpu_custom_call.1} parent=1 // pred_fallthru
      _
    // Predicated region
    $region34: #{tpu_custom_call.1} parent=1 // pred_check
      _
    $region35: #{tpu_custom_call.1} parent=1 // pred_check_branch
      %44 = sbr.rel (0) target = $region37
    $region36: #{tpu_custom_call.1} parent=1 // pred_region
      _
    $region37: #{tpu_custom_call.1} parent=1 // pred_fallthru
      _
    // Predicated region
    $region38: #{tpu_custom_call.1} parent=1 // pred_check
      _
    $region39: #{tpu_custom_call.1} parent=1 // pred_check_branch
      %46 = sbr.rel (0) target = $region41
    $region40: #{tpu_custom_call.1} parent=1 // pred_region
      _
    $region41: #{tpu_custom_call.1} parent=1 // pred_fallthru
      _
    // Predicated region
    $region42: #{tpu_custom_call.1} parent=1 // pred_check
      _
    $region43: #{tpu_custom_call.1} parent=1 // pred_check_branch
      %48 = sbr.rel (0) target = $region45
    $region44: #{tpu_custom_call.1} parent=1 // pred_region
      %49 = dma.done [#allocation5], 16
    $region45: #{tpu_custom_call.1} parent=1 // pred_fallthru
      _
    %50 = sfence
    %v51 = vld [vmem:[%s1] sm:$0xf]
    %v52 = vld [vmem:[%s2] sm:$0xff]
    %v53 = vld [vmem:[%s2 + $0x8] sm:$0xff]
    %v54 = vld [vmem:[%s2 + $0x10] sm:$0xff]
    %v55 = vld [vmem:[%s2 + $0x18] sm:$0xff]
    %v56 = vld [vmem:[%s3] sm:$0xff]
    %v57 = vld [vmem:[%s3 + $0x8] sm:$0xff]
    %v58 = vld [vmem:[%s3 + $0x10] sm:$0xff]
    %v59 = vld [vmem:[%s3 + $0x18] sm:$0xff]
    %61 = vset.pattern.permute.xlu0 0
    %62 = vperm.xlu0 %61, %v52
    %v63 = vpop.permute.xlu0 %62
    %66 = vset.pattern.permute.xlu0 0
    %67 = vperm.xlu0 %66, %v53
    %v68 = vpop.permute.xlu0 %67
    %71 = vset.pattern.permute.xlu0 0
    %72 = vperm.xlu0 %71, %v54
    %v73 = vpop.permute.xlu0 %72
    %76 = vset.pattern.permute.xlu0 0
    %77 = vperm.xlu0 %76, %v55
    %v78 = vpop.permute.xlu0 %77
    %v81 = vlaneseq
    %v82 = vshrl.u32 %v81, 7
    %v83 = vsub.s32 0, %v82
    %v84 = vrot.slane %v51, %v83
    %v85 = vlaneseq
    %v86 = vshrl.u32 %v85, 7
    %v87 = vsub.s32 2, %v86
    %v88 = vrot.slane %v51, %v87
    %v91 = vlaneseq
    %v92 = vshrl.u32 %v91, 7
    %v93 = vsub.s32 0, %v92
    %v94 = vrot.slane %v84, %v93
    %v95 = vlaneseq
    %v96 = vshrl.u32 %v95, 7
    %v97 = vsub.s32 0, %v96
    %v98 = vrot.slane %v88, %v97
    %v99 = vmul.f32 %v63, %v94
    %v100 = vmul.f32 %v63, %v98
    %v101 = vmul.f32 %v68, %v94
    %v102 = vmul.f32 %v68, %v98
    %v103 = vmul.f32 %v73, %v94
    %v104 = vmul.f32 %v73, %v98
    %v105 = vmul.f32 %v78, %v94
    %v106 = vmul.f32 %v78, %v98
    %107 = vset.pattern.permute.xlu0 1
    %108 = vperm.xlu0 %107, %v52
    %v109 = vpop.permute.xlu0 %108
    %111 = vset.pattern.permute.xlu0 1
    %112 = vperm.xlu0 %111, %v53
    %v113 = vpop.permute.xlu0 %112
    %115 = vset.pattern.permute.xlu0 1
    %116 = vperm.xlu0 %115, %v54
    %v117 = vpop.permute.xlu0 %116
    %119 = vset.pattern.permute.xlu0 1
    %120 = vperm.xlu0 %119, %v55
    %v121 = vpop.permute.xlu0 %120
    %v123 = vlaneseq
    %v124 = vshrl.u32 %v123, 7
    %v125 = vsub.s32 1, %v124
    %v126 = vrot.slane %v51, %v125
    %v127 = vlaneseq
    %v128 = vshrl.u32 %v127, 7
    %v129 = vsub.s32 3, %v128
    %v130 = vrot.slane %v51, %v129
    %v133 = vlaneseq
    %v134 = vshrl.u32 %v133, 7
    %v135 = vsub.s32 1, %v134
    %v136 = vrot.slane %v126, %v135
    %v137 = vlaneseq
    %v138 = vshrl.u32 %v137, 7
    %v139 = vsub.s32 1, %v138
    %v140 = vrot.slane %v130, %v139
    %v141 = vmul.f32 %v109, %v136
    %v142 = vmul.f32 %v109, %v140
    %v143 = vmul.f32 %v113, %v136
    %v144 = vmul.f32 %v113, %v140
    %v145 = vmul.f32 %v117, %v136
    %v146 = vmul.f32 %v117, %v140
    %v147 = vmul.f32 %v121, %v136
    %v148 = vmul.f32 %v121, %v140
    %v149 = vadd.f32 %v99, %v141
    %v150 = vadd.f32 %v100, %v142
    %v151 = vadd.f32 %v101, %v143
    %v152 = vadd.f32 %v102, %v144
    %v153 = vadd.f32 %v103, %v145
    %v154 = vadd.f32 %v104, %v146
    %v155 = vadd.f32 %v105, %v147
    %v156 = vadd.f32 %v106, %v148
    %158 = vset.pattern.permute.xlu0 0
    %159 = vperm.xlu0 %158, %v56
    %v160 = vpop.permute.xlu0 %159
    %163 = vset.pattern.permute.xlu0 0
    %164 = vperm.xlu0 %163, %v57
    %v165 = vpop.permute.xlu0 %164
    %168 = vset.pattern.permute.xlu0 0
    %169 = vperm.xlu0 %168, %v58
    %v170 = vpop.permute.xlu0 %169
    %173 = vset.pattern.permute.xlu0 0
    %174 = vperm.xlu0 %173, %v59
    %v175 = vpop.permute.xlu0 %174
    %v177 = vadd.f32 %v149, %v160
    %v178 = vadd.f32 %v150, %v160
    %v179 = vadd.f32 %v151, %v165
    %v180 = vadd.f32 %v152, %v165
    %v181 = vadd.f32 %v153, %v170
    %v182 = vadd.f32 %v154, %v170
    %v183 = vadd.f32 %v155, %v175
    %v184 = vadd.f32 %v156, %v175
    %v185 = vtanh.pop %v177
    %v186 = vtanh.pop %v178
    %v187 = vtanh.pop %v179
    %v188 = vtanh.pop %v180
    %v189 = vtanh.pop %v181
    %v190 = vtanh.pop %v182
    %v191 = vtanh.pop %v183
    %v192 = vtanh.pop %v184
    %v193 = vld [vmem:[%s4] sm:$0xff]
    %v194 = vld [vmem:[%s4 + $0x8] sm:$0xff]
    %v195 = vld [vmem:[%s4 + $0x10] sm:$0xff]
    %v196 = vld [vmem:[%s4 + $0x18] sm:$0xff]
    %v197 = vld [vmem:[%s5] sm:$0xff]
    %v198 = vld [vmem:[%s5 + $0x8] sm:$0xff]
    %v199 = vld [vmem:[%s5 + $0x10] sm:$0xff]
    %v200 = vld [vmem:[%s5 + $0x18] sm:$0xff]
    %202 = vset.pattern.permute.xlu0 0
    %203 = vperm.xlu0 %202, %v197
    %v204 = vpop.permute.xlu0 %203
    %207 = vset.pattern.permute.xlu0 0
    %208 = vperm.xlu0 %207, %v198
    %v209 = vpop.permute.xlu0 %208
    %212 = vset.pattern.permute.xlu0 0
    %213 = vperm.xlu0 %212, %v199
    %v214 = vpop.permute.xlu0 %213
    %217 = vset.pattern.permute.xlu0 0
    %218 = vperm.xlu0 %217, %v200
    %v219 = vpop.permute.xlu0 %218
    %vm221 = vcmask 261120
    %v223 = vsel %vm221, %v193, 0
    %v226 = vsel %vm221, %v194, 0
    %v229 = vsel %vm221, %v195, 0
    %v232 = vsel %vm221, %v196, 0
    %234 = vmatprep.subr.mxu0 0.0
    %235 = vmatpush1.msra.mxu0 0.0
    %236 = vmatprep.subr.mxu0 0.0
    %237 = vmatpush1.msra.mxu0 0.0
    %238 = vmatprep.subr.mxu0 0.0
    %239 = vmatpush1.msra.mxu0 0.0
    %240 = vmatprep.subr.mxu0 0.0
    %241 = vmatpush1.msra.mxu0 0.0
    %242 = vmatprep.subr.mxu0 0.0
    %243 = vmatpush1.msra.mxu0 0.0
    %244 = vmatprep.subr.mxu0 0.0
    %245 = vmatpush1.msra.mxu0 0.0
    %246 = vmatprep.subr.mxu0 0.0
    %247 = vmatpush1.msra.mxu0 0.0
    %248 = vmatprep.subr.mxu0 0.0
    %249 = vmatpush1.msra.mxu0 0.0
    %250 = vmatprep.subr.mxu0 0.0
    %251 = vmatpush1.msra.mxu0 0.0
    %252 = vmatprep.subr.mxu0 0.0
    %253 = vmatpush1.msra.mxu0 0.0
    %254 = vmatprep.subr.mxu0 0.0
    %255 = vmatpush1.msra.mxu0 0.0
    %256 = vmatprep.subr.mxu0 0.0
    %257 = vmatpush1.msra.mxu0 0.0
    %258 = vmatprep.subr.mxu0 %v192
    %259 = vmatpush1.msra.mxu0 %v191
    %260 = vmatprep.subr.mxu0 %v190
    %261 = vmatpush1.msra.mxu0 %v189
    %262 = vmatprep.subr.mxu0 %v188
    %263 = vmatpush1.msra.mxu0 %v187
    %264 = vmatprep.subr.mxu0 %v186
    %265 = vmatpush1.msra.mxu0 %v185
    %266 = vmatprep.subr.mxu0 0.0
    %267 = vmatpush2.msra.mxu0 0.0
    %268 = vmatprep.subr.mxu0 0.0
    %269 = vmatpush2.msra.mxu0 0.0
    %270 = vmatprep.subr.mxu0 0.0
    %271 = vmatpush2.msra.mxu0 0.0
    %272 = vmatprep.subr.mxu0 0.0
    %273 = vmatpush2.msra.mxu0 0.0
    %274 = vmatprep.subr.mxu0 0.0
    %275 = vmatpush2.msra.mxu0 0.0
    %276 = vmatprep.subr.mxu0 0.0
    %277 = vmatpush2.msra.mxu0 0.0
    %278 = vmatprep.subr.mxu0 0.0
    %279 = vmatpush2.msra.mxu0 0.0
    %280 = vmatprep.subr.mxu0 0.0
    %281 = vmatpush2.msra.mxu0 0.0
    %282 = vmatprep.subr.mxu0 0.0
    %283 = vmatpush2.msra.mxu0 0.0
    %284 = vmatprep.subr.mxu0 0.0
    %285 = vmatpush2.msra.mxu0 0.0
    %286 = vmatprep.subr.mxu0 0.0
    %287 = vmatpush2.msra.mxu0 0.0
    %288 = vmatprep.subr.mxu0 0.0
    %289 = vmatpush2.msra.mxu0 0.0
    %290 = vmatprep.subr.mxu0 0.0
    %291 = vmatpush2.msra.mxu0 0.0
    %292 = vmatprep.subr.mxu0 0.0
    %293 = vmatpush2.msra.mxu0 0.0
    %294 = vmatprep.subr.mxu0 0.0
    %295 = vmatpush2.msra.mxu0 0.0
    %296 = vmatprep.subr.mxu0 0.0
    %297 = vmatpush2.msra.mxu0 0.0
    %298 = vmatprep.mubr.f32.mxu0 0.0
    %299 = vmatmul.mubr.f32.gmra.mxu0 %v223
    %v300 = vpop.f32.mrf.mxu0
    %v301 = vadd.f32 %v204, %v300
    %v302 = vpop.f32.mrf.mxu0
    %v303 = vadd.f32 %v204, %v302
    %304 = vmatprep.mubr.f32.mxu0 0.0
    %305 = vmatmul.mubr.f32.gmra.mxu0 %v226
    %v306 = vpop.f32.mrf.mxu0
    %v307 = vadd.f32 %v209, %v306
    %v308 = vpop.f32.mrf.mxu0
    %v309 = vadd.f32 %v209, %v308
    %310 = vmatprep.mubr.f32.mxu0 0.0
    %311 = vmatmul.mubr.f32.gmra.mxu0 %v229
    %v312 = vpop.f32.mrf.mxu0
    %v313 = vadd.f32 %v214, %v312
    %v314 = vpop.f32.mrf.mxu0
    %v315 = vadd.f32 %v214, %v314
    %316 = vmatprep.mubr.f32.mxu0 0.0
    %317 = vmatmul.mubr.f32.gmra.mxu0 %v232
    %v318 = vpop.f32.mrf.mxu0
    %v319 = vadd.f32 %v219, %v318
    %v320 = vpop.f32.mrf.mxu0
    %v321 = vadd.f32 %v219, %v320
    %322 = vdwg.mxu0
    %v323 = vtanh.pop %v301
    %v324 = vtanh.pop %v303
    %v325 = vtanh.pop %v307
    %v326 = vtanh.pop %v309
    %v327 = vtanh.pop %v313
    %v328 = vtanh.pop %v315
    %v329 = vtanh.pop %v319
    %v330 = vtanh.pop %v321
    %v331 = vld [vmem:[%s6] sm:$0xff]
    %v332 = vld [vmem:[%s6 + $0x8] sm:$0xff]
    %v333 = vld [vmem:[%s6 + $0x10] sm:$0xff]
    %v334 = vld [vmem:[%s6 + $0x18] sm:$0xff]
    %v335 = vld [vmem:[%s7] sm:$0xff]
    %v336 = vld [vmem:[%s7 + $0x8] sm:$0xff]
    %v337 = vld [vmem:[%s7 + $0x10] sm:$0xff]
    %v338 = vld [vmem:[%s7 + $0x18] sm:$0xff]
    %340 = vset.pattern.permute.xlu0 0
    %341 = vperm.xlu0 %340, %v335
    %v342 = vpop.permute.xlu0 %341
    %345 = vset.pattern.permute.xlu0 0
    %346 = vperm.xlu0 %345, %v336
    %v347 = vpop.permute.xlu0 %346
    %350 = vset.pattern.permute.xlu0 0
    %351 = vperm.xlu0 %350, %v337
    %v352 = vpop.permute.xlu0 %351
    %355 = vset.pattern.permute.xlu0 0
    %356 = vperm.xlu0 %355, %v338
    %v357 = vpop.permute.xlu0 %356
    %v360 = vsel %vm221, %v331, 0
    %v363 = vsel %vm221, %v332, 0
    %v366 = vsel %vm221, %v333, 0
    %v369 = vsel %vm221, %v334, 0
    %371 = vmatprep.subr.mxu0 0.0
    %372 = vmatpush1.msra.mxu0 0.0
    %373 = vmatprep.subr.mxu0 0.0
    %374 = vmatpush1.msra.mxu0 0.0
    %375 = vmatprep.subr.mxu0 0.0
    %376 = vmatpush1.msra.mxu0 0.0
    %377 = vmatprep.subr.mxu0 0.0
    %378 = vmatpush1.msra.mxu0 0.0
    %379 = vmatprep.subr.mxu0 0.0
    %380 = vmatpush1.msra.mxu0 0.0
    %381 = vmatprep.subr.mxu0 0.0
    %382 = vmatpush1.msra.mxu0 0.0
    %383 = vmatprep.subr.mxu0 0.0
    %384 = vmatpush1.msra.mxu0 0.0
    %385 = vmatprep.subr.mxu0 0.0
    %386 = vmatpush1.msra.mxu0 0.0
    %387 = vmatprep.subr.mxu0 0.0
    %388 = vmatpush1.msra.mxu0 0.0
    %389 = vmatprep.subr.mxu0 0.0
    %390 = vmatpush1.msra.mxu0 0.0
    %391 = vmatprep.subr.mxu0 0.0
    %392 = vmatpush1.msra.mxu0 0.0
    %393 = vmatprep.subr.mxu0 0.0
    %394 = vmatpush1.msra.mxu0 0.0
    %395 = vmatprep.subr.mxu0 %v330
    %396 = vmatpush1.msra.mxu0 %v329
    %397 = vmatprep.subr.mxu0 %v328
    %398 = vmatpush1.msra.mxu0 %v327
    %399 = vmatprep.subr.mxu0 %v326
    %400 = vmatpush1.msra.mxu0 %v325
    %401 = vmatprep.subr.mxu0 %v324
    %402 = vmatpush1.msra.mxu0 %v323
    %403 = vmatprep.subr.mxu0 0.0
    %404 = vmatpush2.msra.mxu0 0.0
    %405 = vmatprep.subr.mxu0 0.0
    %406 = vmatpush2.msra.mxu0 0.0
    %407 = vmatprep.subr.mxu0 0.0
    %408 = vmatpush2.msra.mxu0 0.0
    %409 = vmatprep.subr.mxu0 0.0
    %410 = vmatpush2.msra.mxu0 0.0
    %411 = vmatprep.subr.mxu0 0.0
    %412 = vmatpush2.msra.mxu0 0.0
    %413 = vmatprep.subr.mxu0 0.0
    %414 = vmatpush2.msra.mxu0 0.0
    %415 = vmatprep.subr.mxu0 0.0
    %416 = vmatpush2.msra.mxu0 0.0
    %417 = vmatprep.subr.mxu0 0.0
    %418 = vmatpush2.msra.mxu0 0.0
    %419 = vmatprep.subr.mxu0 0.0
    %420 = vmatpush2.msra.mxu0 0.0
    %421 = vmatprep.subr.mxu0 0.0
    %422 = vmatpush2.msra.mxu0 0.0
    %423 = vmatprep.subr.mxu0 0.0
    %424 = vmatpush2.msra.mxu0 0.0
    %425 = vmatprep.subr.mxu0 0.0
    %426 = vmatpush2.msra.mxu0 0.0
    %427 = vmatprep.subr.mxu0 0.0
    %428 = vmatpush2.msra.mxu0 0.0
    %429 = vmatprep.subr.mxu0 0.0
    %430 = vmatpush2.msra.mxu0 0.0
    %431 = vmatprep.subr.mxu0 0.0
    %432 = vmatpush2.msra.mxu0 0.0
    %433 = vmatprep.subr.mxu0 0.0
    %434 = vmatpush2.msra.mxu0 0.0
    %435 = vmatprep.mubr.f32.mxu0 0.0
    %436 = vmatmul.mubr.f32.gmra.mxu0 %v360
    %v437 = vpop.f32.mrf.mxu0
    %v438 = vadd.f32 %v342, %v437
    %v439 = vpop.f32.mrf.mxu0
    %v440 = vadd.f32 %v342, %v439
    %441 = vmatprep.mubr.f32.mxu0 0.0
    %442 = vmatmul.mubr.f32.gmra.mxu0 %v363
    %v443 = vpop.f32.mrf.mxu0
    %v444 = vadd.f32 %v347, %v443
    %v445 = vpop.f32.mrf.mxu0
    %v446 = vadd.f32 %v347, %v445
    %447 = vmatprep.mubr.f32.mxu0 0.0
    %448 = vmatmul.mubr.f32.gmra.mxu0 %v366
    %v449 = vpop.f32.mrf.mxu0
    %v450 = vadd.f32 %v352, %v449
    %v451 = vpop.f32.mrf.mxu0
    %v452 = vadd.f32 %v352, %v451
    %453 = vmatprep.mubr.f32.mxu0 0.0
    %454 = vmatmul.mubr.f32.gmra.mxu0 %v369
    %v455 = vpop.f32.mrf.mxu0
    %v456 = vadd.f32 %v357, %v455
    %v457 = vpop.f32.mrf.mxu0
    %v458 = vadd.f32 %v357, %v457
    %459 = vdwg.mxu0
    %v460 = vtanh.pop %v438
    %v461 = vtanh.pop %v440
    %v462 = vtanh.pop %v444
    %v463 = vtanh.pop %v446
    %v464 = vtanh.pop %v450
    %v465 = vtanh.pop %v452
    %v466 = vtanh.pop %v456
    %v467 = vtanh.pop %v458
    %v468 = vld [vmem:[%s8] sm:$0x1]
    %v469 = vld [vmem:[#allocation2] sm:$0x1]
    %471 = vset.pattern.permute.xlu0 0
    %472 = vperm.xlu0 %471, %v469
    %v473 = vpop.permute.xlu0 %472
    %v475 = vlaneseq
    %v476 = vshrl.u32 %v475, 7
    %v477 = vsub.s32 0, %v476
    %v478 = vrot.slane %v473, %v477
    %v480 = vsel %vm221, %v468, 0
    %482 = vmatprep.subr.mxu0 0.0
    %483 = vmatpush1.msra.mxu0 0.0
    %484 = vmatprep.subr.mxu0 0.0
    %485 = vmatpush1.msra.mxu0 0.0
    %486 = vmatprep.subr.mxu0 0.0
    %487 = vmatpush1.msra.mxu0 0.0
    %488 = vmatprep.subr.mxu0 0.0
    %489 = vmatpush1.msra.mxu0 0.0
    %490 = vmatprep.subr.mxu0 0.0
    %491 = vmatpush1.msra.mxu0 0.0
    %492 = vmatprep.subr.mxu0 0.0
    %493 = vmatpush1.msra.mxu0 0.0
    %494 = vmatprep.subr.mxu0 0.0
    %495 = vmatpush1.msra.mxu0 0.0
    %496 = vmatprep.subr.mxu0 0.0
    %497 = vmatpush1.msra.mxu0 0.0
    %498 = vmatprep.subr.mxu0 0.0
    %499 = vmatpush1.msra.mxu0 0.0
    %500 = vmatprep.subr.mxu0 0.0
    %501 = vmatpush1.msra.mxu0 0.0
    %502 = vmatprep.subr.mxu0 0.0
    %503 = vmatpush1.msra.mxu0 0.0
    %504 = vmatprep.subr.mxu0 0.0
    %505 = vmatpush1.msra.mxu0 0.0
    %506 = vmatprep.subr.mxu0 %v467
    %507 = vmatpush1.msra.mxu0 %v466
    %508 = vmatprep.subr.mxu0 %v465
    %509 = vmatpush1.msra.mxu0 %v464
    %510 = vmatprep.subr.mxu0 %v463
    %511 = vmatpush1.msra.mxu0 %v462
    %512 = vmatprep.subr.mxu0 %v461
    %513 = vmatpush1.msra.mxu0 %v460
    %514 = vmatprep.subr.mxu0 0.0
    %515 = vmatpush2.msra.mxu0 0.0
    %516 = vmatprep.subr.mxu0 0.0
    %517 = vmatpush2.msra.mxu0 0.0
    %518 = vmatprep.subr.mxu0 0.0
    %519 = vmatpush2.msra.mxu0 0.0
    %520 = vmatprep.subr.mxu0 0.0
    %521 = vmatpush2.msra.mxu0 0.0
    %522 = vmatprep.subr.mxu0 0.0
    %523 = vmatpush2.msra.mxu0 0.0
    %524 = vmatprep.subr.mxu0 0.0
    %525 = vmatpush2.msra.mxu0 0.0
    %526 = vmatprep.subr.mxu0 0.0
    %527 = vmatpush2.msra.mxu0 0.0
    %528 = vmatprep.subr.mxu0 0.0
    %529 = vmatpush2.msra.mxu0 0.0
    %530 = vmatprep.subr.mxu0 0.0
    %531 = vmatpush2.msra.mxu0 0.0
    %532 = vmatprep.subr.mxu0 0.0
    %533 = vmatpush2.msra.mxu0 0.0
    %534 = vmatprep.subr.mxu0 0.0
    %535 = vmatpush2.msra.mxu0 0.0
    %536 = vmatprep.subr.mxu0 0.0
    %537 = vmatpush2.msra.mxu0 0.0
    %538 = vmatprep.subr.mxu0 0.0
    %539 = vmatpush2.msra.mxu0 0.0
    %540 = vmatprep.subr.mxu0 0.0
    %541 = vmatpush2.msra.mxu0 0.0
    %542 = vmatprep.subr.mxu0 0.0
    %543 = vmatpush2.msra.mxu0 0.0
    %544 = vmatprep.subr.mxu0 0.0
    %545 = vmatpush2.msra.mxu0 0.0
    %546 = vmatprep.mubr.f32.mxu0 0.0
    %547 = vmatmul.mubr.f32.gmra.mxu0 %v480
    %v548 = vpop.f32.mrf.mxu0
    %v549 = vadd.f32 %v478, %v548
    %v550 = vpop.f32.mrf.mxu0
    %v551 = vadd.f32 %v478, %v550
    %552 = vdwg.mxu0
    %s553 = sld [smem:[#allocation3]]
    %s554 = sld [smem:[#allocation3 + $0x1]]
    %s555 = sld [smem:[#allocation3 + $0x2]]
    %s556 = sld [smem:[#allocation3 + $0x3]]
    %v557 = vstv %s553
    %v558 = vsub.f32 %v51, %v557
    %v559 = vstv %s554
    %v560 = vsub.f32 %v51, %v559
    %v561 = vmul.f32 %v558, %v560
    %v562 = vstv %s555
    %v563 = vsub.f32 %v51, %v562
    %v565 = vrot.slane %v563, 7
    %v566 = vrot.slane %v565, 2
    %v568 = vmul.f32 %v561, %v566
    %v569 = vstv %s556
    %v570 = vsub.f32 %v51, %v569
    %v572 = vrot.slane %v570, 7
    %v573 = vrot.slane %v572, 2
    %v575 = vmul.f32 %v568, %v573
    %v576 = vmul.f32 %v51, 3.1415927
    %v577 = vand.u32 2147483647, %v576
    %vm578 = vcmp.le.f32.partialorder %v577, 0.7853982
    %vm579 = vcmp.lt.s32.totalorder %v576, 0
    %v580 = vand.u32 %v576, 2139095040
    %v581 = vshrl.u32 %v580, 23
    %v582 = vsub.s32 %v581, 127
    %v583 = vand.u32 2147483647, %v576
    %v584 = vand.u32 %v583, 8388607
    %v585 = vor.u32 %v584, 8388608
    %v586 = vsub.s32 0, %v585
    %v587 = vadd.s32 %v582, 1
    %vm588 = vcmp.gt.s32.totalorder %v587, 0
    %v589 = vsel %vm588, %v587, 0
    %v590 = vshrl.u32 %v589, 5
    %v591 = vand.u32 %v589, 31
    %v592 = vsub.s32 32, %v591
    %v593 = vshrl.u32 683565275, %v592
    %v594 = vshll.u32 683565275, %v591
    %v595 = vshrl.u32 2475754826, %v592
    %v596 = vor.u32 %v594, %v595
    %v597 = vshll.u32 2475754826, %v591
    %v598 = vshrl.u32 2131351028, %v592
    %v599 = vor.u32 %v597, %v598
    %v600 = vshll.u32 2131351028, %v591
    %v601 = vshrl.u32 2102212464, %v592
    %v602 = vor.u32 %v600, %v601
    %v603 = vshll.u32 2102212464, %v591
    %v604 = vshrl.u32 920167782, %v592
    %v605 = vor.u32 %v603, %v604
    %v606 = vshll.u32 920167782, %v591
    %v607 = vshrl.u32 1326507024, %v592
    %v608 = vor.u32 %v606, %v607
    %vm609 = vcmp.lt.s32.totalorder %v590, 1
    %vm610 = vcmp.lt.s32.totalorder %v590, 2
    %vm611 = vcmp.lt.s32.totalorder %v590, 3
    %vm612 = vcmp.lt.s32.totalorder %v590, 4
    %v613 = vsel %vm609, %v593, %v596
    %v614 = vsel %vm612, %v602, 2102212464
    %v615 = vsel %vm611, %v599, %v614
    %v616 = vsel %vm610, %v613, %v615
    %v617 = vsel %vm609, %v596, %v599
    %v618 = vsel %vm612, %v605, 920167782
    %v619 = vsel %vm611, %v602, %v618
    %v620 = vsel %vm610, %v617, %v619
    %v621 = vsel %vm609, %v599, %v602
    %v622 = vsel %vm612, %v608, 1326507024
    %v623 = vsel %vm611, %v605, %v622
    %v624 = vsel %vm610, %v621, %v623
    %v625 = vshll.u32 %v585, 8
    %v626 = vmul.u32.u64.compose %v625, %v624
    %v627 = vextract.low.u32 %v626
    %v628 = vextract.high.u32 %v626
    %v629 = vmul.u32.u64.compose %v625, %v620
    %v630 = vextract.low.u32 %v629
    %v631 = vextract.high.u32 %v629
    %v632 = vmul.u32 %v625, %v616
    %v633 = vadd.s32 %v628, %v630
    %vm634 = vc.u32 %v628, %v630
    %v635 = vadd.s32 %v631, 1
    %v636 = vsel %vm634, %v635, %v631
    %v637 = vadd.s32 %v632, %v636
    %v638 = vadd.s32 %v637, 536870912
    %v639 = vshrl.u32 %v638, 30
    %v640 = vshll.u32 %v639, 30
    %v641 = vsub.s32 %v637, %v640
    %vm642 = vcmp.lt.s32.totalorder %v641, 0
    %v643 = vsub.s32 0, %v641
    %v644 = vsel %vm642, %v643, %v641
    %v645 = vclz %v644
    %v646 = vsub.s32 %v645, 2
    %vm647 = vcmp.gt.s32.totalorder 0, %v646
    %v648 = vsel %vm647, 0, %v646
    %v649 = vsub.s32 32, %v648
    %v650 = vshll.u32 %v641, %v648
    %v651 = vshrl.u32 %v633, %v649
    %v652 = vor.u32 %v650, %v651
    %v653 = vsub.s32 4294967266, %v648
    %v654 = vadd.s32 %v653, 127
    %v655 = vshll.u32 %v654, 23
    %v656 = vor.u32 4788187, %v655
    %v657 = vand.u32 2147483647, %v656
    %v659 = vcvt.s32.f32 %v652
    %v660 = vmul.f32 %v659, %v657
    %v661 = vxor.u32 %v660, 2147483648
    %v662 = vsel %vm579, %v661, %v660
    %v663 = vsub.s32 4, %v639
    %v664 = vsel %vm579, %v663, %v639
    %v665 = vsel %vm578, %v576, %v662
    %v666 = vsel %vm578, 0, %v664
    %v667 = vcosq.f32.pop %v665
    %v668 = vsinq.f32.pop %v665
    %vm669 = vweird.f32 %v576
    %v670 = vadd.s32 %v666, 3
    %v671 = vand.u32 %v670, 3
    %vm672 = vcmp.lt.s32.totalorder %v671, 2
    %vm673 = vcmp.eq.s32.totalorder %v671, 0
    %v674 = vxor.u32 %v668, 2147483648
    %v675 = vsel %vm673, %v667, %v674
    %vm676 = vcmp.eq.s32.totalorder %v671, 2
    %v677 = vxor.u32 %v667, 2147483648
    %v678 = vsel %vm676, %v677, %v668
    %v679 = vsel %vm672, %v675, %v678
    %v680 = vsel %vm669, nan, %v679
    %v682 = vrot.slane %v680, 7
    %v683 = vrot.slane %v682, 2
    %v685 = vmul.f32 %v680, %v683
    %v688 = vcombine.low %v549, %v551
    %v690 = vunpack.c.l.s4 1983009808
    %v691 = vunpack.c.0.s8 %v690
    %v692 = vlaneseq
    %v693 = vshrl.u32 %v692, 7
    %v694 = vsub.s32 %v691, %v693
    %v695 = vrot.slane %v688, %v694
    %v697 = vmul.f32 %v575, %v695
    %v698 = vadd.f32 %v697, %v685
    %v701 = vunpack.c.l.s4 1966171168
    %v702 = vunpack.c.0.s8 %v701
    %v703 = vlaneseq
    %v704 = vshrl.u32 %v703, 7
    %v705 = vsub.s32 %v702, %v704
    %v706 = vrot.slane %v698, %v705
    %v708 = vlaneseq
    %vm709 = vcmp.ge.s32.totalorder %v708, 0
    %vm710 = vcmp.lt.s32.totalorder %v708, 256
    %vm711 = vmand %vm709, %vm710
    %712 = vst.msk [vmem:[#allocation6] sm:$0x3] %vm711, %v706
    // Predicated region
    $region46: #{tpu_custom_call.1} parent=1 // pred_check
      _
    $region47: #{tpu_custom_call.1} parent=1 // pred_check_branch
      %714 = sbr.rel (0) target = $region49
    $region48: #{tpu_custom_call.1} parent=1 // pred_region
      %s716 = ssub.s32 32, 32
      %717 = vsyncadd [#allocation4], %s716
      %s719 = sshll.u32 [#allocation6], 4
      %s720 = int_to_ptr.vmem [resolvable:$true] %s719
      %722 = dma.vmem_to_hbm [thread:$0]  %s720, 32, %s10, [#allocation4]
    $region49: #{tpu_custom_call.1} parent=1 // pred_fallthru
      _
    // Predicated region
    $region50: #{tpu_custom_call.1} parent=1 // pred_check
      _
    $region51: #{tpu_custom_call.1} parent=1 // pred_check_branch
      %724 = sbr.rel (0) target = $region53
    $region52: #{tpu_custom_call.1} parent=1 // pred_region
      %725 = dma.done [#allocation4], 32
    $region53: #{tpu_custom_call.1} parent=1 // pred_fallthru
      _
    %726 = vsyncpa [#allocation4], 1
    %727 = vsyncpa [#allocation5], 1

</llo_original>
